<compile_context>
chip_gen: v7x
topology: tpu7x:2x2x1
jax: 0.10.0
libtpu: 0.0.40
codegen_flags: <defaults>
</compile_context>

<pallas_src>
import math
import functools

import numpy as np
import jax
import jax.numpy as jnp
from jax import lax
from jax.experimental import pallas as pl
from jax.experimental.pallas import tpu as pltpu


def _round_up(x, m):
    return (x + m - 1) // m * m


def _elu_feature_map(x):
    # elu(x) + 1  ==  x + 1  (x > 0)   |   exp(x)  (x <= 0)
    return jnp.where(x > 0, x + 1.0, jnp.exp(jnp.minimum(x, 0.0)))


def _layer_norm(x, gamma, beta, eps=1e-5):
    mu = jnp.mean(x, axis=-1, keepdims=True)
    xc = x - mu
    var = jnp.mean(xc * xc, axis=-1, keepdims=True)
    return xc * lax.rsqrt(var + eps) * gamma + beta


def _kv_reduce_kernel(k_ref, v_ref, wk_ref, wv_ref, hmask_ref, fused_ref,
                      ktv_s, ksum_s, *, inv_s, s_valid, ts, dm, mask_rows):
    """Accumulate per-head K^T V and sum_S K over S-tiles; emit fused RHS."""
    st = pl.program_id(1)

    @pl.when(st == 0)
    def _():
        ktv_s[...] = jnp.zeros_like(ktv_s)
        ksum_s[...] = jnp.zeros_like(ksum_s)

    k_b = k_ref[0]                                                    # (ts, dm) bf16
    v_b = v_ref[0]
    kp = _elu_feature_map(
        jnp.dot(k_b, wk_ref[...], preferred_element_type=jnp.float32))
    if mask_rows:  # zero padded S rows (elu(0)+1 == 1 would pollute the sums)
        row = st * ts + lax.broadcasted_iota(jnp.int32, (ts, 1), 0)
        kp = jnp.where(row < s_valid, kp, 0.0)
    vp = jnp.dot(v_b, wv_ref[...],
                 preferred_element_type=jnp.float32) * inv_s          # (ts, dm) f32

    # bf16 MXU operands, f32 accumulation across S (in VMEM scratch).
    ktv_s[...] += lax.dot_general(
        kp.astype(jnp.bfloat16), vp.astype(jnp.bfloat16),
        (((0,), (0,)), ((), ())), preferred_element_type=jnp.float32)
    ksum_s[...] += jnp.sum(kp, axis=0, keepdims=True)

    @pl.when(st == pl.num_programs(1) - 1)
    def _():
        hm = hmask_ref[...]                                           # (dm, dm) f32
        r = lax.broadcasted_iota(jnp.int32, (dm, dm), 0)
        c = lax.broadcasted_iota(jnp.int32, (dm, dm), 1)
        diag_ksum = (r == c).astype(jnp.float32) * ksum_s[...]        # diag(sum_S K)
        # D[d, j] = ksum[d] * hmask[d, j]   (once per batch, cheap)
        d_mat = jnp.dot(diag_ksum.astype(jnp.bfloat16), hm.astype(jnp.bfloat16),
                        preferred_element_type=jnp.float32)
        fused = jnp.concatenate([ktv_s[...] * hm, d_mat], axis=1)     # (dm, 2dm)
        fused_ref[0] = fused.astype(fused_ref.dtype)


def _attn_kernel(fused_ref, q_ref, wq_ref, wm_ref, w1_ref, w2_ref,
                 g1_ref, b1_ref, g2_ref, b2_ref, out_ref,
                 *, eps, s_len, dm, hidden_chunk, n_chunks):
    """One (batch, L-tile) step: Q side of linear attention + merge + MLP."""
    q_bf = q_ref[0]                                                   # (tl, dm) bf16
    q_f32 = q_bf.astype(jnp.float32)

    # TODO(synk): for head_dim >= 128, switch the masked full-dm matmuls to a
    # per-head batched dot_general (cuts the nhead-x FLOP overhead of the mask
    # trick); below 128 the masked full matmul keeps the MXU lane-dense.
    qp = _elu_feature_map(
        jnp.dot(q_bf, wq_ref[...], preferred_element_type=jnp.float32))

    # One MXU call yields [numerator | denominator] of linear attention.
    res = jnp.dot(qp.astype(jnp.bfloat16), fused_ref[0],
                  preferred_element_type=jnp.float32)                 # (tl, 2dm)
    num = res[:, :dm]
    den = res[:, dm:]
    attn = num * pl.reciprocal(den + eps, approx=True) * s_len        # (tl, dm) f32

    msg = jnp.dot(attn.astype(jnp.bfloat16), wm_ref[...],
                  preferred_element_type=jnp.float32)
    x1 = _layer_norm(msg + q_f32, g1_ref[...], b1_ref[...])
    x1_bf = x1.astype(jnp.bfloat16)

    # MLP with the hidden dimension tiled (static, fully unrolled) so the
    # (tl, 4*dm) intermediate is never materialised in f32.
    acc = jnp.zeros_like(q_f32)
    for c in range(n_chunks):
        sl = slice(c * hidden_chunk, (c + 1) * hidden_chunk)
        h = jnp.maximum(
            jnp.dot(x1_bf, w1_ref[:, sl], preferred_element_type=jnp.float32),
            0.0)
        acc = acc + jnp.dot(h.astype(jnp.bfloat16), w2_ref[sl, :],
                            preferred_element_type=jnp.float32)

    out = _layer_norm(q_f32 + acc, g2_ref[...], b2_ref[...])
    out_ref[0] = out.astype(out_ref.dtype)
    # TODO(synk): optionally emit bf16 output + single-buffer the constant-index
    # weight blocks (pl.Buffered(1)) to halve writeback BW / weight VMEM.


class MHAttention:
    """JAX/Pallas port of the PyTorch MHAttention (linear-attention block)."""

    def __init__(self, d_model, nhead, key):
        assert d_model % nhead == 0
        self.d_model = d_model
        self.nhead = nhead
        self.dim = d_model // nhead
        self.eps = 1e-6  # LinearAttention eps

        ks = jax.random.split(key, 10)
        f32, bf16 = jnp.float32, jnp.bfloat16
        s_in = 1.0 / math.sqrt(d_model)
        s_hid = 1.0 / math.sqrt(4 * d_model)

        def w(k, shape, scale):  # bf16 master weights (MXU operands)
            return (jax.random.normal(k, shape, f32) * scale).astype(bf16)

        self.wq = w(ks[0], (d_model, d_model), s_in)
        self.wk = w(ks[1], (d_model, d_model), s_in)
        self.wv = w(ks[2], (d_model, d_model), s_in)
        self.wmerge = w(ks[3], (d_model, d_model), s_in)
        self.w1 = w(ks[4], (d_model, 4 * d_model), s_in)
        self.w2 = w(ks[5], (4 * d_model, d_model), s_hid)
        # LayerNorm affine params stay f32 (torch inits ones/zeros; perturbed
        # slightly so the correctness check exercises them).
        self.g1 = 1.0 + 0.1 * jax.random.normal(ks[6], (1, d_model), f32)
        self.b1 = 0.1 * jax.random.normal(ks[7], (1, d_model), f32)
        self.g2 = 1.0 + 0.1 * jax.random.normal(ks[8], (1, d_model), f32)
        self.b2 = 0.1 * jax.random.normal(ks[9], (1, d_model), f32)
        # Block-diagonal head mask (used only by the small KV-reduction kernel).
        cols = np.arange(d_model)
        self.hmask = jnp.asarray(
            (cols[:, None] // self.dim) == (cols[None, :] // self.dim),
            dtype=f32)

    def params_np(self):
        names = ["wq", "wk", "wv", "wmerge", "w1", "w2", "g1", "b1", "g2", "b2"]
        return {n: np.asarray(jnp.asarray(getattr(self, n), jnp.float32),
                              np.float64) for n in names}

    def __call__(self, q, k, v, tile_l=256, tile_s=512):
        n, l, dm = q.shape
        s = k.shape[1]
        assert dm == self.d_model
        assert k.shape == (n, s, dm) and v.shape == (n, s, dm)

        # bf16 activations into the kernels (MXU operands; f32 accumulation).
        q = q.astype(jnp.bfloat16)
        k = k.astype(jnp.bfloat16)
        v = v.astype(jnp.bfloat16)

        tl = min(tile_l, _round_up(l, 8))
        l_pad = _round_up(l, tl)
        if l_pad != l:
            q = jnp.pad(q, ((0, 0), (0, l_pad - l), (0, 0)))
        ts = min(tile_s, _round_up(s, 8))
        s_pad = _round_up(s, ts)
        if s_pad != s:
            k = jnp.pad(k, ((0, 0), (0, s_pad - s), (0, 0)))
            v = jnp.pad(v, ((0, 0), (0, s_pad - s), (0, 0)))

        hidden = 4 * dm
        hidden_chunk = 512 if hidden % 512 == 0 else hidden
        n_chunks = hidden // hidden_chunk

        full2d = lambda b, t: (0, 0)

        # Explicit scoped-VMEM limit derived from the real footprint, clamped
        # into the range that is safe on v5e / v6e / v7x.
        def vmem_limit(nbytes):
            return int(min(64 << 20, max(32 << 20, 2 * nbytes)))

        kv_bytes = (2 * 2 * ts * dm * 2          # k, v tiles (double-buffered)
                    + 2 * 3 * dm * dm * 4        # Wk, Wv, hmask
                    + dm * 2 * dm * 2            # fused output block
                    + (dm * dm + dm) * 4         # f32 accumulators
                    + 2 * ts * dm * 4)           # kp / vp temporaries
        fused = pl.pallas_call(
            functools.partial(_kv_reduce_kernel, inv_s=1.0 / s, s_valid=s,
                              ts=ts, dm=dm, mask_rows=(s_pad != s)),
            out_shape=jax.ShapeDtypeStruct((n, dm, 2 * dm), jnp.bfloat16),
            grid=(n, s_pad // ts),
            in_specs=[
                pl.BlockSpec((1, ts, dm), lambda b, st: (b, st, 0)),   # k
                pl.BlockSpec((1, ts, dm), lambda b, st: (b, st, 0)),   # v
                pl.BlockSpec((dm, dm), full2d),                        # Wk
                pl.BlockSpec((dm, dm), full2d),                        # Wv
                pl.BlockSpec((dm, dm), full2d),                        # head mask
            ],
            out_specs=pl.BlockSpec((1, dm, 2 * dm), lambda b, st: (b, 0, 0)),
            scratch_shapes=[
                pltpu.VMEM((dm, dm), jnp.float32),   # K^T V accumulator
                pltpu.VMEM((1, dm), jnp.float32),    # sum_S K accumulator
            ],
            compiler_params=pltpu.CompilerParams(
                dimension_semantics=("parallel", "arbitrary"),
                vmem_limit_bytes=vmem_limit(kv_bytes)),
        )(k, v, self.wk, self.wv, self.hmask)

        main_bytes = (2 * 10 * dm * dm * 2       # Wq, Wmerge, W1, W2 (dbuf)
                      + 2 * 2 * dm * dm * 2      # fused RHS (dbuf)
                      + 2 * tl * dm * (2 + 4)    # q in / out tiles (dbuf)
                      + tl * (8 * dm + hidden_chunk) * 4)   # f32 temporaries
        out = pl.pallas_call(
            functools.partial(_attn_kernel, eps=self.eps, s_len=float(s),
                              dm=dm, hidden_chunk=hidden_chunk,
                              n_chunks=n_chunks),
            out_shape=jax.ShapeDtypeStruct((n, l_pad, dm), jnp.float32),
            grid=(n, l_pad // tl),
            in_specs=[
                pl.BlockSpec((1, dm, 2 * dm), lambda b, lt: (b, 0, 0)),  # fused KV
                pl.BlockSpec((1, tl, dm), lambda b, lt: (b, lt, 0)),     # q
                pl.BlockSpec((dm, dm), full2d),                          # Wq
                pl.BlockSpec((dm, dm), full2d),                          # Wmerge
                pl.BlockSpec((dm, 4 * dm), full2d),                      # W1
                pl.BlockSpec((4 * dm, dm), full2d),                      # W2
                pl.BlockSpec((1, dm), full2d),                           # gamma1
                pl.BlockSpec((1, dm), full2d),                           # beta1
                pl.BlockSpec((1, dm), full2d),                           # gamma2
                pl.BlockSpec((1, dm), full2d),                           # beta2
            ],
            out_specs=pl.BlockSpec((1, tl, dm), lambda b, lt: (b, lt, 0)),
            compiler_params=pltpu.CompilerParams(
                dimension_semantics=("parallel", "parallel"),
                vmem_limit_bytes=vmem_limit(main_bytes)),
        )(fused, q, self.wq, self.wmerge, self.w1, self.w2,
          self.g1, self.b1, self.g2, self.b2)

        return out[:, :l]


def _reference_forward(q, k, v, p, nhead, eps=1e-6, ln_eps=1e-5):
    """NumPy (float64) re-implementation of the PyTorch forward."""
    q = np.asarray(q, np.float64)
    k = np.asarray(k, np.float64)
    v = np.asarray(v, np.float64)
    n, l, dm = q.shape
    s = k.shape[1]
    d = dm // nhead

    def fm(x):
        return np.where(x > 0, x + 1.0, np.exp(np.minimum(x, 0.0)))

    def ln(x, g, b):
        mu = x.mean(-1, keepdims=True)
        var = ((x - mu) ** 2).mean(-1, keepdims=True)
        return (x - mu) / np.sqrt(var + ln_eps) * g + b

    Q = fm(q @ p["wq"]).reshape(n, l, nhead, d)
    K = fm(k @ p["wk"]).reshape(n, s, nhead, d)
    V = (v @ p["wv"]).reshape(n, s, nhead, d) / s
    KV = np.einsum("nshd,nshv->nhdv", K, V)
    Z = 1.0 / (np.einsum("nlhd,nhd->nlh", Q, K.sum(axis=1)) + eps)
    msg = np.einsum("nlhd,nhdv,nlh->nlhv", Q, KV, Z) * s
    msg = msg.reshape(n, l, dm) @ p["wmerge"]
    x1 = ln(msg + q, p["g1"], p["b1"])
    h = np.maximum(x1 @ p["w1"], 0.0) @ p["w2"]
    return ln(q + h, p["g2"], p["b2"])


if __name__ == "__main__":
    key = jax.random.PRNGKey(0)
    d_model, nhead = 32, 4          # head dim = 8
    batch, seq_q, seq_kv = 2, 8, 16
    kq, kk, kv, kp = jax.random.split(key, 4)
    q = jax.random.normal(kq, (batch, seq_q, d_model), jnp.float32)
    k = jax.random.normal(kk, (batch, seq_kv, d_model), jnp.float32)
    v = jax.random.normal(kv, (batch, seq_kv, d_model), jnp.float32)

    module = MHAttention(d_model, nhead, key=kp)
    out = jax.block_until_ready(module(q, k, v))

    ref = _reference_forward(np.asarray(q), np.asarray(k), np.asarray(v),
                             module.params_np(), nhead)

    assert out.shape == (batch, seq_q, d_model), out.shape
    # Tolerance accommodates bf16 MXU operands (f32 accumulation) and the
    # approximate EUP reciprocal versus the float64 reference.
    np.testing.assert_allclose(np.asarray(out), ref, rtol=4e-2, atol=4e-2)
    print("KERNEL_OK")
</pallas_src>

<mosaic_0001>
module attributes {stable_mosaic.version = 11 : i64} {
  func.func @_kv_reduce_kernel(%arg0: i32, %arg1: i32, %arg2: memref<1x16x32xbf16, #tpu.memory_space<vmem>>, %arg3: memref<1x16x32xbf16, #tpu.memory_space<vmem>>, %arg4: memref<32x32xbf16, #tpu.memory_space<vmem>>, %arg5: memref<32x32xbf16, #tpu.memory_space<vmem>>, %arg6: memref<32x32xf32, #tpu.memory_space<vmem>>, %arg7: memref<1x32x64xbf16, #tpu.memory_space<vmem>>, %arg8: memref<32x32xf32, #tpu.memory_space<vmem>>, %arg9: memref<1x32xf32, #tpu.memory_space<vmem>>) attributes {dimension_semantics = [#tpu.dimension_semantics<parallel>, #tpu.dimension_semantics<arbitrary>], iteration_bounds = array<i64: 2, 1>, scalar_prefetch = 0 : i64, scratch_operands = 2 : i64, tpu.core_type = #tpu.core_type<tc>, window_params = [{transform_indices = @transform_0, window_bounds = array<i64: 1, 16, 32>}, {transform_indices = @transform_1, window_bounds = array<i64: 1, 16, 32>}, {pipeline_mode = #tpu.pipeline_mode<synchronous>, transform_indices = @transform_2, window_bounds = array<i64: 32, 32>}, {pipeline_mode = #tpu.pipeline_mode<synchronous>, transform_indices = @transform_3, window_bounds = array<i64: 32, 32>}, {pipeline_mode = #tpu.pipeline_mode<synchronous>, transform_indices = @transform_4, window_bounds = array<i64: 32, 32>}, {transform_indices = @transform_5, window_bounds = array<i64: 1, 32, 64>}]} {
    %c0_i32 = arith.constant 0 : i32
    %0 = arith.cmpi eq, %arg1, %c0_i32 : i32
    %1 = arith.extui %0 : i1 to i32
    %c0_i32_0 = arith.constant 0 : i32
    %2 = arith.cmpi ne, %1, %c0_i32_0 : i32
    scf.if %2 {
      %cst_27 = arith.constant 0.000000e+00 : f32
      %35 = vector.broadcast %cst_27 : f32 to vector<32x32xf32>
      %c0_28 = arith.constant 0 : index
      %c0_29 = arith.constant 0 : index
      %36 = vector.load %arg8[%c0_28, %c0_29] : memref<32x32xf32, #tpu.memory_space<vmem>>, vector<32x32xf32>
      tpu.vector_store %arg8[%c0_28, %c0_29], %35 {strides = array<i32>} : memref<32x32xf32, #tpu.memory_space<vmem>>, vector<32x32xf32>,
      %cst_30 = arith.constant 0.000000e+00 : f32
      %37 = vector.broadcast %cst_30 : f32 to vector<1x32xf32>
      %c0_31 = arith.constant 0 : index
      %c0_32 = arith.constant 0 : index
      %38 = vector.load %arg9[%c0_31, %c0_32] : memref<1x32xf32, #tpu.memory_space<vmem>>, vector<1x32xf32>
      tpu.vector_store %arg9[%c0_31, %c0_32], %37 {strides = array<i32>} : memref<1x32xf32, #tpu.memory_space<vmem>>, vector<1x32xf32>,
    } else {
    }
    %c0 = arith.constant 0 : index
    %c0_1 = arith.constant 0 : index
    %c0_2 = arith.constant 0 : index
    %3 = vector.load %arg2[%c0, %c0_1, %c0_2] : memref<1x16x32xbf16, #tpu.memory_space<vmem>>, vector<1x16x32xbf16>
    %4 = vector.shape_cast %3 : vector<1x16x32xbf16> to vector<16x32xbf16>
    %c0_3 = arith.constant 0 : index
    %c0_4 = arith.constant 0 : index
    %c0_5 = arith.constant 0 : index
    %5 = vector.load %arg3[%c0_3, %c0_4, %c0_5] : memref<1x16x32xbf16, #tpu.memory_space<vmem>>, vector<1x16x32xbf16>
    %6 = vector.shape_cast %5 : vector<1x16x32xbf16> to vector<16x32xbf16>
    %c0_6 = arith.constant 0 : index
    %c0_7 = arith.constant 0 : index
    %7 = vector.load %arg4[%c0_6, %c0_7] : memref<32x32xbf16, #tpu.memory_space<vmem>>, vector<32x32xbf16>
    %cst = arith.constant dense<0.000000e+00> : vector<16x32xf32>
    %8 = tpu.matmul %4, %7, %cst {dimension_numbers = #tpu.dot_dimension_numbers<[1], [0], [0], [1], [0, 0, 1, 1], [], []>} : vector<16x32xbf16>, vector<32x32xbf16>, vector<16x32xf32> -> vector<16x32xf32>
    %cst_8 = arith.constant 0.000000e+00 : f32
    %9 = vector.broadcast %cst_8 : f32 to vector<16x32xf32>
    %10 = arith.cmpf ogt, %8, %9 : vector<16x32xf32>
    %cst_9 = arith.constant 1.000000e+00 : f32
    %11 = vector.broadcast %cst_9 : f32 to vector<16x32xf32>
    %12 = arith.addf %8, %11 : vector<16x32xf32>
    %cst_10 = arith.constant 0.000000e+00 : f32
    %13 = vector.broadcast %cst_10 : f32 to vector<16x32xf32>
    %14 = arith.minimumf %8, %13 : vector<16x32xf32>
    %15 = math.exp %14 : vector<16x32xf32>
    %16 = arith.select %10, %12, %15 : vector<16x32xi1>, vector<16x32xf32>
    %c0_11 = arith.constant 0 : index
    %c0_12 = arith.constant 0 : index
    %17 = vector.load %arg5[%c0_11, %c0_12] : memref<32x32xbf16, #tpu.memory_space<vmem>>, vector<32x32xbf16>
    %cst_13 = arith.constant dense<0.000000e+00> : vector<16x32xf32>
    %18 = tpu.matmul %6, %17, %cst_13 {dimension_numbers = #tpu.dot_dimension_numbers<[1], [0], [0], [1], [0, 0, 1, 1], [], []>} : vector<16x32xbf16>, vector<32x32xbf16>, vector<16x32xf32> -> vector<16x32xf32>
    %cst_14 = arith.constant 6.250000e-02 : f32
    %19 = vector.broadcast %cst_14 : f32 to vector<16x32xf32>
    %20 = arith.mulf %18, %19 : vector<16x32xf32>
    %c0_15 = arith.constant 0 : index
    %c0_16 = arith.constant 0 : index
    %21 = vector.load %arg8[%c0_15, %c0_16] : memref<32x32xf32, #tpu.memory_space<vmem>>, vector<32x32xf32>
    %22 = arith.truncf %16 : vector<16x32xf32> to vector<16x32xbf16>
    %23 = arith.truncf %20 : vector<16x32xf32> to vector<16x32xbf16>
    %cst_17 = arith.constant dense<0.000000e+00> : vector<32x32xf32>
    %24 = tpu.matmul %22, %23, %cst_17 {dimension_numbers = #tpu.dot_dimension_numbers<[0], [0], [1], [1], [0, 1, 1, 1], [], []>} : vector<16x32xbf16>, vector<16x32xbf16>, vector<32x32xf32> -> vector<32x32xf32>
    %25 = arith.addf %21, %24 : vector<32x32xf32>
    %c0_18 = arith.constant 0 : index
    %c0_19 = arith.constant 0 : index
    %26 = vector.load %arg8[%c0_18, %c0_19] : memref<32x32xf32, #tpu.memory_space<vmem>>, vector<32x32xf32>
    tpu.vector_store %arg8[%c0_18, %c0_19], %25 {strides = array<i32>} : memref<32x32xf32, #tpu.memory_space<vmem>>, vector<32x32xf32>,
    %c0_20 = arith.constant 0 : index
    %c0_21 = arith.constant 0 : index
    %27 = vector.load %arg9[%c0_20, %c0_21] : memref<1x32xf32, #tpu.memory_space<vmem>>, vector<1x32xf32>
    %cst_22 = arith.constant dense<0.000000e+00> : vector<32xf32>
    %28 = vector.multi_reduction <add>, %16, %cst_22 [0] : vector<16x32xf32> to vector<32xf32>
    %29 = vector.shape_cast %28 : vector<32xf32> to vector<1x32xf32>
    %30 = arith.addf %27, %29 : vector<1x32xf32>
    %c0_23 = arith.constant 0 : index
    %c0_24 = arith.constant 0 : index
    %31 = vector.load %arg9[%c0_23, %c0_24] : memref<1x32xf32, #tpu.memory_space<vmem>>, vector<1x32xf32>
    tpu.vector_store %arg9[%c0_23, %c0_24], %30 {strides = array<i32>} : memref<1x32xf32, #tpu.memory_space<vmem>>, vector<1x32xf32>,
    %c0_i32_25 = arith.constant 0 : i32
    %32 = arith.cmpi eq, %arg1, %c0_i32_25 : i32
    %33 = arith.extui %32 : i1 to i32
    %c0_i32_26 = arith.constant 0 : i32
    %34 = arith.cmpi ne, %33, %c0_i32_26 : i32
    scf.if %34 {
      %c0_27 = arith.constant 0 : index
      %c0_28 = arith.constant 0 : index
      %35 = vector.load %arg6[%c0_27, %c0_28] : memref<32x32xf32, #tpu.memory_space<vmem>>, vector<32x32xf32>
      %36 = tpu.iota {dimensions = array<i32: 0>} : vector<32x32xi32>
      %37 = tpu.iota {dimensions = array<i32: 1>} : vector<32x32xi32>
      %38 = arith.cmpi eq, %36, %37 : vector<32x32xi32>
      %39 = arith.extui %38 : vector<32x32xi1> to vector<32x32xi32>
      %40 = arith.sitofp %39 : vector<32x32xi32> to vector<32x32xf32>
      %c0_29 = arith.constant 0 : index
      %c0_30 = arith.constant 0 : index
      %41 = vector.load %arg9[%c0_29, %c0_30] : memref<1x32xf32, #tpu.memory_space<vmem>>, vector<1x32xf32>
      %42 = vector.broadcast %41 : vector<1x32xf32> to vector<32x32xf32>
      %43 = arith.mulf %40, %42 : vector<32x32xf32>
      %44 = arith.truncf %43 : vector<32x32xf32> to vector<32x32xbf16>
      %45 = arith.truncf %35 : vector<32x32xf32> to vector<32x32xbf16>
      %cst_31 = arith.constant dense<0.000000e+00> : vector<32x32xf32>
      %46 = tpu.matmul %44, %45, %cst_31 {dimension_numbers = #tpu.dot_dimension_numbers<[1], [0], [0], [1], [0, 0, 1, 1], [], []>} : vector<32x32xbf16>, vector<32x32xbf16>, vector<32x32xf32> -> vector<32x32xf32>
      %c0_32 = arith.constant 0 : index
      %c0_33 = arith.constant 0 : index
      %47 = vector.load %arg8[%c0_32, %c0_33] : memref<32x32xf32, #tpu.memory_space<vmem>>, vector<32x32xf32>
      %48 = arith.mulf %47, %35 : vector<32x32xf32>
      %49 = tpu.concatenate %48, %46 in 1 : vector<32x32xf32>, vector<32x32xf32> -> vector<32x64xf32>
      %50 = arith.truncf %49 : vector<32x64xf32> to vector<32x64xbf16>
      %c0_34 = arith.constant 0 : index
      %c0_35 = arith.constant 0 : index
      %c0_36 = arith.constant 0 : index
      %51 = vector.load %arg7[%c0_34, %c0_35, %c0_36] : memref<1x32x64xbf16, #tpu.memory_space<vmem>>, vector<1x32x64xbf16>
      %52 = vector.shape_cast %51 : vector<1x32x64xbf16> to vector<32x64xbf16>
      %53 = vector.shape_cast %50 : vector<32x64xbf16> to vector<1x32x64xbf16>
      tpu.vector_store %arg7[%c0_34, %c0_35, %c0_36], %53 {strides = array<i32>} : memref<1x32x64xbf16, #tpu.memory_space<vmem>>, vector<1x32x64xbf16>,
    } else {
    }
    return
  }
  func.func @transform_0(%arg0: i32, %arg1: i32) -> (i32, i32, i32) {
    %c0_i32 = arith.constant 0 : i32
    %c0_i32_0 = arith.constant 0 : i32
    return %arg0, %arg1, %c0_i32 : i32, i32, i32
  }
  func.func @transform_1(%arg0: i32, %arg1: i32) -> (i32, i32, i32) {
    %c0_i32 = arith.constant 0 : i32
    %c0_i32_0 = arith.constant 0 : i32
    return %arg0, %arg1, %c0_i32 : i32, i32, i32
  }
  func.func @transform_2(%arg0: i32, %arg1: i32) -> (i32, i32) {
    %c0_i32 = arith.constant 0 : i32
    %c0_i32_0 = arith.constant 0 : i32
    %c0_i32_1 = arith.constant 0 : i32
    return %c0_i32, %c0_i32_0 : i32, i32
  }
  func.func @transform_3(%arg0: i32, %arg1: i32) -> (i32, i32) {
    %c0_i32 = arith.constant 0 : i32
    %c0_i32_0 = arith.constant 0 : i32
    %c0_i32_1 = arith.constant 0 : i32
    return %c0_i32, %c0_i32_0 : i32, i32
  }
  func.func @transform_4(%arg0: i32, %arg1: i32) -> (i32, i32) {
    %c0_i32 = arith.constant 0 : i32
    %c0_i32_0 = arith.constant 0 : i32
    %c0_i32_1 = arith.constant 0 : i32
    return %c0_i32, %c0_i32_0 : i32, i32
  }
  func.func @transform_5(%arg0: i32, %arg1: i32) -> (i32, i32, i32) {
    %c0_i32 = arith.constant 0 : i32
    %c0_i32_0 = arith.constant 0 : i32
    %c0_i32_1 = arith.constant 0 : i32
    return %arg0, %c0_i32, %c0_i32_0 : i32, i32, i32
  }
}

</mosaic_0001>

<llo_original>
// kernel: tpu_custom_call.1
$region0: #{tpu_custom_call.1}
  #allocation0 [shape = 'u32[]', space=smem, size = 0x4, offset = 0x4, fixed_abs, tag = 'smem constant byte address 0x4 - core index']
  #allocation1 [shape = 'u32[144,128]{1,0:T(1,128)}', space=vmem, size = 0x12000, scoped, tag = 'internal scratch']
  #allocation2 [shape = 'f32[32,32]{1,0:T(8,128)}', space=vmem, size = 0x4000, scoped, tag = 'scratch operand']
  #allocation3 [shape = 'f32[1,32]{1,0:T(1,128)}', space=vmem, size = 0x200, scoped, tag = 'scratch operand']
  %s0 = inlined_call_operand.hbm [shape: bf16[2,16,32], index: 0, kind: input, shape index: {}]
  %s1 = inlined_call_operand.hbm [shape: bf16[2,16,32], index: 1, kind: input, shape index: {}]
  %s2 = inlined_call_operand.hbm [shape: bf16[32,32], index: 2, kind: input, shape index: {}]
  %s3 = inlined_call_operand.hbm [shape: bf16[32,32], index: 3, kind: input, shape index: {}]
  %s4 = inlined_call_operand.hbm [shape: f32[32,32], index: 4, kind: input, shape index: {}]
  %s5 = inlined_call_operand.hbm [shape: bf16[2,32,64], index: 5, kind: output, shape index: {}]
  %s6 = sld [smem:[#allocation0]]
  $region81: #{tpu_custom_call.1} parent=0
    _
  %s8 = ssub.s32 1, %s6
  %s9 = scalar_select 0, %s8, %s6
  $region1: #{tpu_custom_call.1} parent=0
    #allocation4 [shape = 'u8[8192]{0}', space=vmem, size = 0x2000, scoped, tag = 'input window, operand 0']
    #allocation5 [shape = 's32[2]{0}', space=sflag, size = 0x8, scoped, tag = 'scoped memory for tpu_custom_call.1']
    #allocation6 [shape = 's32[2]{0}', space=sflag, size = 0x8, scoped, tag = 'scoped memory for tpu_custom_call.1']
    #allocation7 [shape = 'u8[8192]{0}', space=vmem, size = 0x2000, scoped, tag = 'input window, operand 1']
    #allocation8 [shape = 's32[2]{0}', space=sflag, size = 0x8, scoped, tag = 'scoped memory for tpu_custom_call.1']
    #allocation9 [shape = 'u8[8192]{0}', space=vmem, size = 0x2000, scoped, tag = 'input window, operand 2, single buffered']
    #allocation10 [shape = 'u8[8192]{0}', space=vmem, size = 0x2000, scoped, tag = 'input window, operand 3, single buffered']
    #allocation11 [shape = 's32[1]{0}', space=sflag, size = 0x4, scoped, tag = 'scoped memory for tpu_custom_call.1']
    #allocation12 [shape = 'u8[16384]{0}', space=vmem, size = 0x4000, scoped, tag = 'input window, operand 4, single buffered']
    #allocation13 [shape = 'u8[16384]{0}', space=vmem, size = 0x4000, scoped, tag = 'output window, operand 0']
    %10 = vsyncpa [#allocation5], 0
    %s11 = scalar_lea.sflag [#allocation5], 1
    %12 = vsyncpa %s11, 0
    %13 = vsyncpa [#allocation8], 0
    %s14 = scalar_lea.sflag [#allocation8], 1
    %15 = vsyncpa %s14, 0
    %16 = vsyncpa [#allocation11], 0
    %17 = vsyncpa [#allocation6], 0
    %s18 = scalar_lea.sflag [#allocation6], 1
    %19 = vsyncpa %s18, 0
    loop: start=0, step=1, limit=4
    $region2: #{tpu_custom_call.1} parent=1 // loop_pre_header
      _
    $region3: #{tpu_custom_call.1} parent=1 // loop_header
      %s21 = sphi 0, %s25
      %p22 = scmp.ge.s32.totalorder %s21, 4
      %s28 = sphi 0, %s40
      %s29 = sphi 0, %s36
      %s30 = sphi 0, %s28
      %s31 = sphi 0, %s29
      %s32 = sphi 0, %s30
      %s33 = sphi 0, %s31
      %s45 = sphi 0, %s47
      %s48 = sphi 0, %s45
      %s49 = sphi 0, %s48
      %s65 = sphi 0, %s49
      %s73 = sphi 0, %s75
      %s76 = sphi 0, %s73
      %s77 = sphi 0, %s76
      %s93 = sphi 0, %s77
      %s97 = sphi 0, %s97
      %s99 = sphi 0, %s97
      %s100 = sphi 0, %s99
      %s114 = sphi 0, %s100
      %s118 = sphi 0, %s118
      %s120 = sphi 0, %s118
      %s121 = sphi 0, %s120
      %s135 = sphi 0, %s121
      %s139 = sphi 0, %s139
      %s141 = sphi 0, %s139
      %s142 = sphi 0, %s141
      %s156 = sphi 0, %s142
      %s162 = sphi 0, %s164
      %s165 = sphi 0, %s162
      %s166 = sphi 0, %s165
      %s182 = sphi 0, %s166
    $region4: #{tpu_custom_call.1} parent=1 // loop_header_branch
      %24 = sbr.rel (%p22) target = $region8
    $region5: #{tpu_custom_call.1} parent=1 // loop_body
      %s26 = ssub.s32 %s21, 1
      %s27 = ssub.s32 %s21, 2
      %s34 = sadd.s32 1, %s29
      %p35 = scmp.ge.s32.totalorder %s34, 1
      %s36 = scalar_select %p35, 0, %s34
      %s37 = sadd.s32 1, %s28
      %s38 = scalar_select %p35, %s37, %s28
      %p39 = scmp.ge.s32.totalorder %s38, 2
      %s40 = scalar_select %p39, 0, %s38
      %s41 = ssub.s32 %s28, %s40
      %s42 = ssub.s32 %s29, %s36
      %s43 = sor.u32 %s41, %s42
      %p44 = scmp.eq.s32.totalorder %s43, 0
      %s46 = sadd.s32 %s45, 1
      %s47 = scalar_select %p44, %s45, %s46
      %p50 = pneg %p44
      %p51 = scmp.eq.s32.totalorder %s21, 1
      %p52 = por %p50, %p51
      %p53 = scmp.ne.s32.totalorder %s45, %s48
      %p54 = scmp.eq.s32.totalorder %s21, 0
      %p55 = por %p53, %p54
      %p56 = scmp.ne.s32.totalorder %s45, %s48
      %p57 = scmp.eq.s32.totalorder %s26, 1
      %p58 = por %p56, %p57
      %p59 = scmp.ne.s32.totalorder %s48, %s49
      %p60 = scmp.eq.s32.totalorder %s26, 0
      %p61 = por %p59, %p60
      %p62 = scmp.ne.s32.totalorder %s48, %s49
      %p63 = scmp.eq.s32.totalorder %s27, 1
      %p64 = por %p62, %p63
      %p66 = scmp.ne.s32.totalorder %s49, %s65
      %p67 = scmp.eq.s32.totalorder %s27, 0
      %p68 = por %p66, %p67
      %s69 = ssub.s32 %s28, %s40
      %s70 = ssub.s32 %s29, %s36
      %s71 = sor.u32 %s69, %s70
      %p72 = scmp.eq.s32.totalorder %s71, 0
      %s74 = sadd.s32 %s73, 1
      %s75 = scalar_select %p72, %s73, %s74
      %p78 = pneg %p72
      %p79 = scmp.eq.s32.totalorder %s21, 1
      %p80 = por %p78, %p79
      %p81 = scmp.ne.s32.totalorder %s73, %s76
      %p82 = scmp.eq.s32.totalorder %s21, 0
      %p83 = por %p81, %p82
      %p84 = scmp.ne.s32.totalorder %s73, %s76
      %p85 = scmp.eq.s32.totalorder %s26, 1
      %p86 = por %p84, %p85
      %p87 = scmp.ne.s32.totalorder %s76, %s77
      %p88 = scmp.eq.s32.totalorder %s26, 0
      %p89 = por %p87, %p88
      %p90 = scmp.ne.s32.totalorder %s76, %s77
      %p91 = scmp.eq.s32.totalorder %s27, 1
      %p92 = por %p90, %p91
      %p94 = scmp.ne.s32.totalorder %s77, %s93
      %p95 = scmp.eq.s32.totalorder %s27, 0
      %p96 = por %p94, %p95
      %s98 = sadd.s32 %s97, 1
      %p101 = scmp.eq.s32.totalorder %s21, 1
      %p102 = scmp.ne.s32.totalorder %s97, %s99
      %p103 = scmp.eq.s32.totalorder %s21, 0
      %p104 = por %p102, %p103
      %p105 = scmp.ne.s32.totalorder %s97, %s99
      %p106 = scmp.eq.s32.totalorder %s26, 1
      %p107 = por %p105, %p106
      %p108 = scmp.ne.s32.totalorder %s99, %s100
      %p109 = scmp.eq.s32.totalorder %s26, 0
      %p110 = por %p108, %p109
      %p111 = scmp.ne.s32.totalorder %s99, %s100
      %p112 = scmp.eq.s32.totalorder %s27, 1
      %p113 = por %p111, %p112
      %p115 = scmp.ne.s32.totalorder %s100, %s114
      %p116 = scmp.eq.s32.totalorder %s27, 0
      %p117 = por %p115, %p116
      %s119 = sadd.s32 %s118, 1
      %p122 = scmp.eq.s32.totalorder %s21, 1
      %p123 = scmp.ne.s32.totalorder %s118, %s120
      %p124 = scmp.eq.s32.totalorder %s21, 0
      %p125 = por %p123, %p124
      %p126 = scmp.ne.s32.totalorder %s118, %s120
      %p127 = scmp.eq.s32.totalorder %s26, 1
      %p128 = por %p126, %p127
      %p129 = scmp.ne.s32.totalorder %s120, %s121
      %p130 = scmp.eq.s32.totalorder %s26, 0
      %p131 = por %p129, %p130
      %p132 = scmp.ne.s32.totalorder %s120, %s121
      %p133 = scmp.eq.s32.totalorder %s27, 1
      %p134 = por %p132, %p133
      %p136 = scmp.ne.s32.totalorder %s121, %s135
      %p137 = scmp.eq.s32.totalorder %s27, 0
      %p138 = por %p136, %p137
      %s140 = sadd.s32 %s139, 1
      %p143 = scmp.eq.s32.totalorder %s21, 1
      %p144 = scmp.ne.s32.totalorder %s139, %s141
      %p145 = scmp.eq.s32.totalorder %s21, 0
      %p146 = por %p144, %p145
      %p147 = scmp.ne.s32.totalorder %s139, %s141
      %p148 = scmp.eq.s32.totalorder %s26, 1
      %p149 = por %p147, %p148
      %p150 = scmp.ne.s32.totalorder %s141, %s142
      %p151 = scmp.eq.s32.totalorder %s26, 0
      %p152 = por %p150, %p151
      %p153 = scmp.ne.s32.totalorder %s141, %s142
      %p154 = scmp.eq.s32.totalorder %s27, 1
      %p155 = por %p153, %p154
      %p157 = scmp.ne.s32.totalorder %s142, %s156
      %p158 = scmp.eq.s32.totalorder %s27, 0
      %p159 = por %p157, %p158
      %s160 = ssub.s32 %s28, %s40
      %p161 = scmp.eq.s32.totalorder %s160, 0
      %s163 = sadd.s32 %s162, 1
      %s164 = scalar_select %p161, %s162, %s163
      %p167 = pneg %p161
      %p168 = scmp.eq.s32.totalorder %s21, 1
      %p169 = por %p167, %p168
      %p170 = scmp.ne.s32.totalorder %s162, %s165
      %p171 = scmp.eq.s32.totalorder %s21, 0
      %p172 = por %p170, %p171
      %p173 = scmp.ne.s32.totalorder %s162, %s165
      %p174 = scmp.eq.s32.totalorder %s26, 1
      %p175 = por %p173, %p174
      %p176 = scmp.ne.s32.totalorder %s165, %s166
      %p177 = scmp.eq.s32.totalorder %s26, 0
      %p178 = por %p176, %p177
      %p179 = scmp.ne.s32.totalorder %s165, %s166
      %p180 = scmp.eq.s32.totalorder %s27, 1
      %p181 = por %p179, %p180
      %p183 = scmp.ne.s32.totalorder %s166, %s182
      %p184 = scmp.eq.s32.totalorder %s27, 0
      %p185 = por %p183, %p184
      %p186 = scmp.le.s32.totalorder 1, %s21
      %p187 = scmp.lt.s32.totalorder %s21, 3
      %p188 = pnand %p186, %p187
      %p189 = pneg %p188
      // Predicated region
      $region9: #{tpu_custom_call.1} parent=5 // pred_check
        _
      $region10: #{tpu_custom_call.1} parent=5 // pred_check_branch
        %191 = sbr.rel (%p188) target = $region12
      $region11: #{tpu_custom_call.1} parent=5 // pred_region
        %s192 = ssub.s32 %s21, 1
        // Predicated region
        $region13: #{tpu_custom_call.1} parent=11 // pred_check
          %p193 = pneg %p110
        $region14: #{tpu_custom_call.1} parent=11 // pred_check_branch
          %195 = sbr.rel (%p193) target = $region16
        $region15: #{tpu_custom_call.1} parent=11 // pred_region
          %s197 = ssub.s32 256, 256
          %198 = vsyncadd [#allocation8], %s197
          %s199 = sshll.u32 [#allocation9], 4
          %s200 = int_to_ptr.vmem [resolvable:$true] %s199
          %205 = dma.hbm_to_vmem [thread:$0]  %s2, 256, %s200, [#allocation8], 64, 64, 4
        $region16: #{tpu_custom_call.1} parent=11 // pred_fallthru
          _
        // Predicated region
        $region17: #{tpu_custom_call.1} parent=11 // pred_check
          %p206 = pneg %p131
        $region18: #{tpu_custom_call.1} parent=11 // pred_check_branch
          %208 = sbr.rel (%p206) target = $region20
        $region19: #{tpu_custom_call.1} parent=11 // pred_region
          %s210 = ssub.s32 256, 256
          %211 = vsyncadd [#allocation11], %s210
          %s212 = sshll.u32 [#allocation10], 4
          %s213 = int_to_ptr.vmem [resolvable:$true] %s212
          %218 = dma.hbm_to_vmem [thread:$0]  %s3, 256, %s213, [#allocation11], 64, 64, 4
        $region20: #{tpu_custom_call.1} parent=11 // pred_fallthru
          _
        // Predicated region
        $region21: #{tpu_custom_call.1} parent=11 // pred_check
          %p219 = pneg %p152
        $region22: #{tpu_custom_call.1} parent=11 // pred_check_branch
          %221 = sbr.rel (%p219) target = $region24
        $region23: #{tpu_custom_call.1} parent=11 // pred_region
          %s223 = ssub.s32 512, 512
          %224 = vsyncadd [#allocation11], %s223
          %s225 = sshll.u32 [#allocation12], 4
          %s226 = int_to_ptr.vmem [resolvable:$true] %s225
          %231 = dma.hbm_to_vmem [thread:$0]  %s4, 512, %s226, [#allocation11], 128, 128, 8
        $region24: #{tpu_custom_call.1} parent=11 // pred_fallthru
          _
      $region12: #{tpu_custom_call.1} parent=5 // pred_fallthru
        _
      %p232 = scmp.lt.s32.totalorder %s21, 2
      // Predicated region
      $region25: #{tpu_custom_call.1} parent=5 // pred_check
        %p233 = pneg %p232
      $region26: #{tpu_custom_call.1} parent=5 // pred_check_branch
        %235 = sbr.rel (%p233) target = $region28
      $region27: #{tpu_custom_call.1} parent=5 // pred_region
        // Predicated region
        $region29: #{tpu_custom_call.1} parent=27 // pred_check
          %p236 = pneg %p55
        $region30: #{tpu_custom_call.1} parent=27 // pred_check_branch
          %238 = sbr.rel (%p236) target = $region32
        $region31: #{tpu_custom_call.1} parent=27 // pred_region
          %s239 = sand.u32 %s45, 1
          %s240 = scalar_lea.sflag [#allocation5], %s239
          %s241 = sand.u32 %s45, 1
          %s242 = smul.addr %s241, 8
          %s243 = scalar_lea.vmem [#allocation4], %s242
          %s244 = smul.u32 2, %s29
          %s246 = ssub.s32 128, 128
          %247 = vsyncadd %s240, %s246
          %s248 = smul.addr %s28, 2
          %s249 = sadd.s32 %s244, %s248
          %s250 = smul.addr %s249, 64
          %s251 = scalar_lea.hbm %s0, %s250
          %s252 = sshll.u32 %s243, 4
          %s253 = int_to_ptr.vmem [resolvable:$true] %s252
          %258 = dma.hbm_to_vmem [thread:$0]  %s251, 128, %s253, %s240, 64, 64, 4
        $region32: #{tpu_custom_call.1} parent=27 // pred_fallthru
          _
        // Predicated region
        $region33: #{tpu_custom_call.1} parent=27 // pred_check
          %p259 = pneg %p83
        $region34: #{tpu_custom_call.1} parent=27 // pred_check_branch
          %261 = sbr.rel (%p259) target = $region36
        $region35: #{tpu_custom_call.1} parent=27 // pred_region
          %s262 = sand.u32 %s21, 1
          %s263 = scalar_lea.sflag [#allocation8], %s262
          %s264 = sand.u32 %s73, 1
          %s265 = smul.addr %s264, 8
          %s266 = scalar_lea.vmem [#allocation7], %s265
          %s267 = smul.u32 2, %s29
          %s269 = ssub.s32 128, 128
          %270 = vsyncadd %s263, %s269
          %s271 = smul.addr %s28, 2
          %s272 = sadd.s32 %s267, %s271
          %s273 = smul.addr %s272, 64
          %s274 = scalar_lea.hbm %s1, %s273
          %s275 = sshll.u32 %s266, 4
          %s276 = int_to_ptr.vmem [resolvable:$true] %s275
          %281 = dma.hbm_to_vmem [thread:$0]  %s274, 128, %s276, %s263, 64, 64, 4
        $region36: #{tpu_custom_call.1} parent=27 // pred_fallthru
          _
      $region28: #{tpu_custom_call.1} parent=5 // pred_fallthru
        _
      %p282 = scmp.le.s32.totalorder 1, %s21
      %p283 = scmp.lt.s32.totalorder %s21, 3
      %p284 = pnand %p282, %p283
      %p285 = pneg %p284
      // Predicated region
      $region37: #{tpu_custom_call.1} parent=5 // pred_check
        _
      $region38: #{tpu_custom_call.1} parent=5 // pred_check_branch
        %287 = sbr.rel (%p284) target = $region40
      $region39: #{tpu_custom_call.1} parent=5 // pred_region
        %s288 = ssub.s32 %s21, 1
        %s289 = sand.u32 %s48, 1
        %s290 = scalar_lea.sflag [#allocation5], %s289
        %s291 = sand.u32 %s48, 1
        %s292 = smul.addr %s291, 8
        %s293 = scalar_lea.vmem [#allocation4], %s292
        // Predicated region
        $region41: #{tpu_custom_call.1} parent=39 // pred_check
          %p294 = pneg %p61
        $region42: #{tpu_custom_call.1} parent=39 // pred_check_branch
          %296 = sbr.rel (%p294) target = $region44
        $region43: #{tpu_custom_call.1} parent=39 // pred_region
          %297 = dma.done %s290, 128
        $region44: #{tpu_custom_call.1} parent=39 // pred_fallthru
          _
        %s298 = sand.u32 %s26, 1
        %s299 = scalar_lea.sflag [#allocation8], %s298
        %s300 = sand.u32 %s76, 1
        %s301 = smul.addr %s300, 8
        %s302 = scalar_lea.vmem [#allocation7], %s301
        // Predicated region
        $region45: #{tpu_custom_call.1} parent=39 // pred_check
          %p303 = pneg %p89
        $region46: #{tpu_custom_call.1} parent=39 // pred_check_branch
          %305 = sbr.rel (%p303) target = $region48
        $region47: #{tpu_custom_call.1} parent=39 // pred_region
          %306 = dma.done %s299, 128
        $region48: #{tpu_custom_call.1} parent=39 // pred_fallthru
          _
        // Predicated region
        $region49: #{tpu_custom_call.1} parent=39 // pred_check
          %p307 = pneg %p110
        $region50: #{tpu_custom_call.1} parent=39 // pred_check_branch
          %309 = sbr.rel (%p307) target = $region52
        $region51: #{tpu_custom_call.1} parent=39 // pred_region
          %310 = dma.done [#allocation8], 256
        $region52: #{tpu_custom_call.1} parent=39 // pred_fallthru
          _
        // Predicated region
        $region53: #{tpu_custom_call.1} parent=39 // pred_check
          %p311 = pneg %p131
        $region54: #{tpu_custom_call.1} parent=39 // pred_check_branch
          %313 = sbr.rel (%p311) target = $region56
        $region55: #{tpu_custom_call.1} parent=39 // pred_region
          %314 = dma.done [#allocation11], 256
        $region56: #{tpu_custom_call.1} parent=39 // pred_fallthru
          _
        // Predicated region
        $region57: #{tpu_custom_call.1} parent=39 // pred_check
          %p315 = pneg %p152
        $region58: #{tpu_custom_call.1} parent=39 // pred_check_branch
          %317 = sbr.rel (%p315) target = $region60
        $region59: #{tpu_custom_call.1} parent=39 // pred_region
          %318 = dma.done [#allocation11], 512
        $region60: #{tpu_custom_call.1} parent=39 // pred_fallthru
          _
        %s319 = sand.u32 %s48, 1
        %s320 = scalar_lea.sflag [#allocation5], %s319
        %s321 = sand.u32 %s48, 1
        %s322 = smul.addr %s321, 8
        %s323 = scalar_lea.vmem [#allocation4], %s322
        %p324 = pneg %p61
        %p325 = pneg %p58
        %s326 = sand.u32 %s26, 1
        %s327 = scalar_lea.sflag [#allocation8], %s326
        %s328 = sand.u32 %s76, 1
        %s329 = smul.addr %s328, 8
        %s330 = scalar_lea.vmem [#allocation7], %s329
        %p331 = pneg %p89
        %p332 = pneg %p86
        %p333 = pneg %p110
        %p334 = pneg %p107
        %p335 = pneg %p131
        %p336 = pneg %p128
        %p337 = pneg %p152
        %p338 = pneg %p149
        %p339 = pneg %p178
        %p340 = pneg %p175
        %s341 = sand.u32 %s165, 1
        %s342 = scalar_lea.sflag [#allocation6], %s341
        %s343 = sand.u32 %s165, 1
        %s344 = smul.addr %s343, 16
        %s345 = scalar_lea.vmem [#allocation13], %s344
        %s346 = smul.u32 2, %s31
        %s347 = smul.u32 2, %s31
        %p349 = scmp.eq.s32.totalorder %s31, 0
        // Predicated region
        $region61: #{tpu_custom_call.1} parent=39 // pred_check
          %p350 = pneg %p349
        $region62: #{tpu_custom_call.1} parent=39 // pred_check_branch
          %352 = sbr.rel (%p350) target = $region64
        $region63: #{tpu_custom_call.1} parent=39 // pred_region
          %vm353 = vcmask 261120
          %354 = vst.msk [vmem:[#allocation2] sm:$0xff] %vm353, 0.0
          %355 = vst.msk [vmem:[#allocation2 + $0x8] sm:$0xff] %vm353, 0.0
          %356 = vst.msk [vmem:[#allocation2 + $0x10] sm:$0xff] %vm353, 0.0
          %357 = vst.msk [vmem:[#allocation2 + $0x18] sm:$0xff] %vm353, 0.0
          %vm358 = vcmask 253952
          %359 = vst.msk [vmem:[#allocation3] sm:$0x1] %vm358, 0.0
        $region64: #{tpu_custom_call.1} parent=39 // pred_fallthru
          _
        %v360 = vld [vmem:[%s293] sm:$0xf]
        %v361 = vld [vmem:[%s293 + $0x4] sm:$0xf]
        %v362 = vld [vmem:[%s302] sm:$0xf]
        %v363 = vld [vmem:[%s302 + $0x4] sm:$0xf]
        %v364 = vld [vmem:[#allocation9] sm:$0xf]
        %v365 = vld [vmem:[#allocation9 + $0x4] sm:$0xf]
        %v366 = vld [vmem:[#allocation9 + $0x8] sm:$0xf]
        %v367 = vld [vmem:[#allocation9 + $0xc] sm:$0xf]
        %v370 = vunpack.c.l.b16 %v360
        %v371 = vunpack.c.l.b16 %v361
        %v372 = vpack.c.b16 %v371, %v370
        %v377 = vunpack.c.l.b16 %v364
        %v378 = vunpack.c.l.b16 %v365
        %v379 = vunpack.c.l.b16 %v366
        %v380 = vunpack.c.l.b16 %v367
        %v381 = vpack.c.b16 %v378, %v377
        %v382 = vpack.c.b16 %v380, %v379
        %vm385 = vcmask 261120
        %v387 = vsel %vm385, %v372, 0
        %389 = vmatprep.subr.bf16.mxu0 0
        %390 = vmatpush1.bf16.msra.mxu0 %v381
        %391 = vmatprep.subr.bf16.mxu0 0
        %392 = vmatpush1.bf16.msra.mxu0 %v382
        %393 = vmatprep.subr.bf16.mxu0 0
        %394 = vmatpush1.bf16.msra.mxu0 0
        %395 = vmatprep.subr.bf16.mxu0 0
        %396 = vmatpush1.bf16.msra.mxu0 0
        %397 = vmatprep.subr.bf16.mxu0 0
        %398 = vmatpush1.bf16.msra.mxu0 0
        %399 = vmatprep.subr.bf16.mxu0 0
        %400 = vmatpush1.bf16.msra.mxu0 0
        %401 = vmatprep.subr.bf16.mxu0 0
        %402 = vmatpush1.bf16.msra.mxu0 0
        %403 = vmatprep.subr.bf16.mxu0 0
        %404 = vmatpush1.bf16.msra.mxu0 0
        %405 = vmatprep.subr.bf16.mxu0 0
        %406 = vmatpush1.bf16.msra.mxu0 0
        %407 = vmatprep.subr.bf16.mxu0 0
        %408 = vmatpush1.bf16.msra.mxu0 0
        %409 = vmatprep.subr.bf16.mxu0 0
        %410 = vmatpush1.bf16.msra.mxu0 0
        %411 = vmatprep.subr.bf16.mxu0 0
        %412 = vmatpush1.bf16.msra.mxu0 0
        %413 = vmatprep.subr.bf16.mxu0 0
        %414 = vmatpush1.bf16.msra.mxu0 0
        %415 = vmatprep.subr.bf16.mxu0 0
        %416 = vmatpush1.bf16.msra.mxu0 0
        %417 = vmatprep.subr.bf16.mxu0 0
        %418 = vmatpush1.bf16.msra.mxu0 0
        %419 = vmatprep.subr.bf16.mxu0 0
        %420 = vmatpush1.bf16.msra.mxu0 0
        %421 = vmatprep.mubr.bf16.mxu0 0
        %422 = vmatmul.mubr.bf16.gmra.mrb[0].mxu0 %v387
        %v423 = vpop.f32.mrb[0].mxu0
        %v424 = vadd.f32 0.0, %v423
        %v425 = vpop.f32.mrb[0].mxu0
        %v426 = vpop.f32.mrb[0].mxu0
        %v427 = vadd.f32 0.0, %v426
        %v428 = vpop.f32.mrb[0].mxu0
        %429 = vdwg.mxu0
        %vm430 = vcmp.gt.f32.partialorder %v424, 0.0
        %vm431 = vcmp.gt.f32.partialorder %v427, 0.0
        %v432 = vadd.f32 %v424, 1.0
        %v433 = vadd.f32 %v427, 1.0
        %v434 = vmin.f32 %v424, 0.0
        %v435 = vmin.f32 %v427, 0.0
        %v436 = vmul.f32 %v434, 1.442695
        %v437 = vpow.pop %v436
        %v438 = vmul.f32 %v435, 1.442695
        %v439 = vpow.pop %v438
        %v440 = vsel %vm430, %v432, %v437
        %v441 = vsel %vm431, %v433, %v439
        %v442 = vld [vmem:[#allocation10] sm:$0xf]
        %v443 = vld [vmem:[#allocation10 + $0x4] sm:$0xf]
        %v444 = vld [vmem:[#allocation10 + $0x8] sm:$0xf]
        %v445 = vld [vmem:[#allocation10 + $0xc] sm:$0xf]
        %v448 = vunpack.c.l.b16 %v362
        %v449 = vunpack.c.l.b16 %v363
        %v450 = vpack.c.b16 %v449, %v448
        %v455 = vunpack.c.l.b16 %v442
        %v456 = vunpack.c.l.b16 %v443
        %v457 = vunpack.c.l.b16 %v444
        %v458 = vunpack.c.l.b16 %v445
        %v459 = vpack.c.b16 %v456, %v455
        %v460 = vpack.c.b16 %v458, %v457
        %v464 = vsel %vm385, %v450, 0
        %466 = vmatprep.subr.bf16.mxu0 0
        %467 = vmatpush1.bf16.msra.mxu0 %v459
        %468 = vmatprep.subr.bf16.mxu0 0
        %469 = vmatpush1.bf16.msra.mxu0 %v460
        %470 = vmatprep.subr.bf16.mxu0 0
        %471 = vmatpush1.bf16.msra.mxu0 0
        %472 = vmatprep.subr.bf16.mxu0 0
        %473 = vmatpush1.bf16.msra.mxu0 0
        %474 = vmatprep.subr.bf16.mxu0 0
        %475 = vmatpush1.bf16.msra.mxu0 0
        %476 = vmatprep.subr.bf16.mxu0 0
        %477 = vmatpush1.bf16.msra.mxu0 0
        %478 = vmatprep.subr.bf16.mxu0 0
        %479 = vmatpush1.bf16.msra.mxu0 0
        %480 = vmatprep.subr.bf16.mxu0 0
        %481 = vmatpush1.bf16.msra.mxu0 0
        %482 = vmatprep.subr.bf16.mxu0 0
        %483 = vmatpush1.bf16.msra.mxu0 0
        %484 = vmatprep.subr.bf16.mxu0 0
        %485 = vmatpush1.bf16.msra.mxu0 0
        %486 = vmatprep.subr.bf16.mxu0 0
        %487 = vmatpush1.bf16.msra.mxu0 0
        %488 = vmatprep.subr.bf16.mxu0 0
        %489 = vmatpush1.bf16.msra.mxu0 0
        %490 = vmatprep.subr.bf16.mxu0 0
        %491 = vmatpush1.bf16.msra.mxu0 0
        %492 = vmatprep.subr.bf16.mxu0 0
        %493 = vmatpush1.bf16.msra.mxu0 0
        %494 = vmatprep.subr.bf16.mxu0 0
        %495 = vmatpush1.bf16.msra.mxu0 0
        %496 = vmatprep.subr.bf16.mxu0 0
        %497 = vmatpush1.bf16.msra.mxu0 0
        %498 = vmatprep.mubr.bf16.mxu0 0
        %499 = vmatmul.mubr.bf16.gmra.mrb[0].mxu0 %v464
        %v500 = vpop.f32.mrb[0].mxu0
        %v501 = vadd.f32 0.0, %v500
        %v502 = vpop.f32.mrb[0].mxu0
        %v503 = vpop.f32.mrb[0].mxu0
        %v504 = vadd.f32 0.0, %v503
        %v505 = vpop.f32.mrb[0].mxu0
        %506 = vdwg.mxu0
        %v507 = vmul.f32 %v501, 0.0625
        %v508 = vmul.f32 %v504, 0.0625
        %v509 = vld [vmem:[#allocation2] sm:$0xff]
        %v510 = vld [vmem:[#allocation2 + $0x8] sm:$0xff]
        %v511 = vld [vmem:[#allocation2 + $0x10] sm:$0xff]
        %v512 = vld [vmem:[#allocation2 + $0x18] sm:$0xff]
        %v513 = vpack.c.bf16 %v441, %v440
        %v514 = vpack.c.bf16 %v508, %v507
        %515 = vxpose.xlu0.c.b16.start [1/8] %v513, 128
        %516 = vxpose.xlu0.c.b16.cont [2/8] 0, 128
        %517 = vxpose.xlu0.c.b16.cont [3/8] 0, 128
        %518 = vxpose.xlu0.c.b16.cont [4/8] 0, 128
        %519 = vxpose.xlu0.c.b16.cont [5/8] 0, 128
        %520 = vxpose.xlu0.c.b16.cont [6/8] 0, 128
        %521 = vxpose.xlu0.c.b16.cont [7/8] 0, 128
        %522 = vxpose.xlu0.c.b16.end [8/8] 0, 128
        %v523 = vpop.trf.xlu0
        %v524 = vpop.trf.xlu0
        %v525 = vpop.trf.xlu0
        %v526 = vpop.trf.xlu0
        %v527 = vpop.trf.xlu0
        %v528 = vpop.trf.xlu0
        %v529 = vpop.trf.xlu0
        %v530 = vpop.trf.xlu0
        %vm531 = vcmask 130048
        %v533 = vsel %vm531, %v523, 0
        %v536 = vsel %vm531, %v524, 0
        %538 = vmatprep.subr.bf16.mxu0 0
        %539 = vmatpush1.bf16.msra.mxu0 %v514
        %540 = vmatprep.subr.bf16.mxu0 0
        %541 = vmatpush1.bf16.msra.mxu0 0
        %542 = vmatprep.subr.bf16.mxu0 0
        %543 = vmatpush1.bf16.msra.mxu0 0
        %544 = vmatprep.subr.bf16.mxu0 0
        %545 = vmatpush1.bf16.msra.mxu0 0
        %546 = vmatprep.subr.bf16.mxu0 0
        %547 = vmatpush1.bf16.msra.mxu0 0
        %548 = vmatprep.subr.bf16.mxu0 0
        %549 = vmatpush1.bf16.msra.mxu0 0
        %550 = vmatprep.subr.bf16.mxu0 0
        %551 = vmatpush1.bf16.msra.mxu0 0
        %552 = vmatprep.subr.bf16.mxu0 0
        %553 = vmatpush1.bf16.msra.mxu0 0
        %554 = vmatprep.subr.bf16.mxu0 0
        %555 = vmatpush1.bf16.msra.mxu0 0
        %556 = vmatprep.subr.bf16.mxu0 0
        %557 = vmatpush1.bf16.msra.mxu0 0
        %558 = vmatprep.subr.bf16.mxu0 0
        %559 = vmatpush1.bf16.msra.mxu0 0
        %560 = vmatprep.subr.bf16.mxu0 0
        %561 = vmatpush1.bf16.msra.mxu0 0
        %562 = vmatprep.subr.bf16.mxu0 0
        %563 = vmatpush1.bf16.msra.mxu0 0
        %564 = vmatprep.subr.bf16.mxu0 0
        %565 = vmatpush1.bf16.msra.mxu0 0
        %566 = vmatprep.subr.bf16.mxu0 0
        %567 = vmatpush1.bf16.msra.mxu0 0
        %568 = vmatprep.subr.bf16.mxu0 0
        %569 = vmatpush1.bf16.msra.mxu0 0
        %570 = vmatprep.mubr.bf16.mxu0 0
        %571 = vmatmul.mubr.bf16.gmra.mrb[0].mxu0 %v533
        %v572 = vpop.f32.mrb[0].mxu0
        %v573 = vadd.f32 0.0, %v572
        %v574 = vpop.f32.mrb[0].mxu0
        %v575 = vpop.f32.mrb[0].mxu0
        %v576 = vadd.f32 0.0, %v575
        %v577 = vpop.f32.mrb[0].mxu0
        %578 = vmatprep.mubr.bf16.mxu0 0
        %579 = vmatmul.mubr.bf16.gmra.mrb[0].mxu0 %v536
        %v580 = vpop.f32.mrb[0].mxu0
        %v581 = vadd.f32 0.0, %v580
        %v582 = vpop.f32.mrb[0].mxu0
        %v583 = vpop.f32.mrb[0].mxu0
        %v584 = vadd.f32 0.0, %v583
        %v585 = vpop.f32.mrb[0].mxu0
        %586 = vdwg.mxu0
        %v587 = vadd.f32 %v509, %v573
        %v588 = vadd.f32 %v510, %v576
        %v589 = vadd.f32 %v511, %v581
        %v590 = vadd.f32 %v512, %v584
        %591 = vst.msk [vmem:[#allocation2] sm:$0xff] %vm385, %v587
        %592 = vst.msk [vmem:[#allocation2 + $0x8] sm:$0xff] %vm385, %v588
        %593 = vst.msk [vmem:[#allocation2 + $0x10] sm:$0xff] %vm385, %v589
        %594 = vst.msk [vmem:[#allocation2 + $0x18] sm:$0xff] %vm385, %v590
        %v595 = vld [vmem:[#allocation3] sm:$0x1]
        %v596 = vsel %vm385, %v440, 0.0
        %v597 = vsel %vm385, %v441, 0.0
        %v598 = vadd.f32 %v596, %v597
        %v599 = vrot.slane %v598, 4
        %v600 = vadd.f32 %v598, %v599
        %v601 = vrot.slane %v600, 2
        %v602 = vadd.f32 %v600, %v601
        %v603 = vrot.slane %v602, 1
        %v604 = vadd.f32 %v602, %v603
        %v605 = vadd.f32 %v595, %v604
        %vm606 = vcmask 253952
        %607 = vst.msk [vmem:[#allocation3] sm:$0x1] %vm606, %v605
        // Predicated region
        $region65: #{tpu_custom_call.1} parent=39 // pred_check
          %p608 = pneg %p349
        $region66: #{tpu_custom_call.1} parent=39 // pred_check_branch
          %610 = sbr.rel (%p608) target = $region68
        $region67: #{tpu_custom_call.1} parent=39 // pred_region
          %v611 = vld [vmem:[#allocation12] sm:$0xff]
          %v612 = vld [vmem:[#allocation12 + $0x8] sm:$0xff]
          %v613 = vld [vmem:[#allocation12 + $0x10] sm:$0xff]
          %v614 = vld [vmem:[#allocation12 + $0x18] sm:$0xff]
          %v615 = vlaneseq
          %v616 = vshrl.u32 %v615, 7
          %v617 = vadd.s32 %v616, 8
          %v618 = vadd.s32 %v616, 16
          %v619 = vadd.s32 %v616, 24
          %v620 = vlaneseq
          %v621 = vand.u32 %v620, 127
          %vm622 = vcmp.eq.s32.totalorder %v616, %v621
          %vm623 = vcmp.eq.s32.totalorder %v617, %v621
          %vm624 = vcmp.eq.s32.totalorder %v618, %v621
          %vm625 = vcmp.eq.s32.totalorder %v619, %v621
          %v626 = vsel %vm622, 1, 0
          %v627 = vsel %vm623, 1, 0
          %v628 = vsel %vm624, 1, 0
          %v629 = vsel %vm625, 1, 0
          %v630 = vcvt.s32.f32 %v626
          %v631 = vcvt.s32.f32 %v627
          %v632 = vcvt.s32.f32 %v628
          %v633 = vcvt.s32.f32 %v629
          %v634 = vld [vmem:[#allocation3] sm:$0x1]
          %v636 = vlaneseq
          %v637 = vshrl.u32 %v636, 7
          %v638 = vsub.s32 0, %v637
          %v639 = vrot.slane %v634, %v638
          %v641 = vmul.f32 %v630, %v639
          %v642 = vmul.f32 %v631, %v639
          %v643 = vmul.f32 %v632, %v639
          %v644 = vmul.f32 %v633, %v639
          %v645 = vpack.c.bf16 %v642, %v641
          %v646 = vpack.c.bf16 %v644, %v643
          %v647 = vpack.c.bf16 %v612, %v611
          %v648 = vpack.c.bf16 %v614, %v613
          %v650 = vsel %vm385, %v645, 0
          %v653 = vsel %vm385, %v646, 0
          %655 = vmatprep.subr.bf16.mxu0 0
          %656 = vmatpush1.bf16.msra.mxu0 %v647
          %657 = vmatprep.subr.bf16.mxu0 0
          %658 = vmatpush1.bf16.msra.mxu0 %v648
          %659 = vmatprep.subr.bf16.mxu0 0
          %660 = vmatpush1.bf16.msra.mxu0 0
          %661 = vmatprep.subr.bf16.mxu0 0
          %662 = vmatpush1.bf16.msra.mxu0 0
          %663 = vmatprep.subr.bf16.mxu0 0
          %664 = vmatpush1.bf16.msra.mxu0 0
          %665 = vmatprep.subr.bf16.mxu0 0
          %666 = vmatpush1.bf16.msra.mxu0 0
          %667 = vmatprep.subr.bf16.mxu0 0
          %668 = vmatpush1.bf16.msra.mxu0 0
          %669 = vmatprep.subr.bf16.mxu0 0
          %670 = vmatpush1.bf16.msra.mxu0 0
          %671 = vmatprep.subr.bf16.mxu0 0
          %672 = vmatpush1.bf16.msra.mxu0 0
          %673 = vmatprep.subr.bf16.mxu0 0
          %674 = vmatpush1.bf16.msra.mxu0 0
          %675 = vmatprep.subr.bf16.mxu0 0
          %676 = vmatpush1.bf16.msra.mxu0 0
          %677 = vmatprep.subr.bf16.mxu0 0
          %678 = vmatpush1.bf16.msra.mxu0 0
          %679 = vmatprep.subr.bf16.mxu0 0
          %680 = vmatpush1.bf16.msra.mxu0 0
          %681 = vmatprep.subr.bf16.mxu0 0
          %682 = vmatpush1.bf16.msra.mxu0 0
          %683 = vmatprep.subr.bf16.mxu0 0
          %684 = vmatpush1.bf16.msra.mxu0 0
          %685 = vmatprep.subr.bf16.mxu0 0
          %686 = vmatpush1.bf16.msra.mxu0 0
          %687 = vmatprep.mubr.bf16.mxu0 0
          %688 = vmatmul.mubr.bf16.gmra.mrb[0].mxu0 %v650
          %v689 = vpop.f32.mrb[0].mxu0
          %v690 = vadd.f32 0.0, %v689
          %v691 = vpop.f32.mrb[0].mxu0
          %v692 = vpop.f32.mrb[0].mxu0
          %v693 = vadd.f32 0.0, %v692
          %v694 = vpop.f32.mrb[0].mxu0
          %695 = vmatprep.mubr.bf16.mxu0 0
          %696 = vmatmul.mubr.bf16.gmra.mrb[0].mxu0 %v653
          %v697 = vpop.f32.mrb[0].mxu0
          %v698 = vadd.f32 0.0, %v697
          %v699 = vpop.f32.mrb[0].mxu0
          %v700 = vpop.f32.mrb[0].mxu0
          %v701 = vadd.f32 0.0, %v700
          %v702 = vpop.f32.mrb[0].mxu0
          %703 = vdwg.mxu0
          %v704 = vld [vmem:[#allocation2] sm:$0xff]
          %v705 = vld [vmem:[#allocation2 + $0x8] sm:$0xff]
          %v706 = vld [vmem:[#allocation2 + $0x10] sm:$0xff]
          %v707 = vld [vmem:[#allocation2 + $0x18] sm:$0xff]
          %v708 = vmul.f32 %v704, %v611
          %v709 = vmul.f32 %v705, %v612
          %v710 = vmul.f32 %v706, %v613
          %v711 = vmul.f32 %v707, %v614
          %716 = vrot.lane.b32.xlu0 %v690, 32
          %v717 = vpop.permute.xlu0 %716
          %718 = vrot.lane.b32.xlu0 %v693, 32
          %v719 = vpop.permute.xlu0 %718
          %720 = vrot.lane.b32.xlu0 %v698, 32
          %v721 = vpop.permute.xlu0 %720
          %722 = vrot.lane.b32.xlu0 %v701, 32
          %v723 = vpop.permute.xlu0 %722
          %v728 = vsel %vm385, %v708, %v717
          %v729 = vsel %vm385, %v709, %v719
          %v730 = vsel %vm385, %v710, %v721
          %v731 = vsel %vm385, %v711, %v723
          %v732 = vpack.c.bf16 %v729, %v728
          %v733 = vpack.c.bf16 %v731, %v730
          %v736 = vunpack.c.l.b16 %v732
          %v737 = vunpack.c.h.b16 %v732
          %v738 = vunpack.c.l.b16 %v733
          %v739 = vunpack.c.h.b16 %v733
          %v740 = vpack.c.b16 %v736, %v736
          %v741 = vpack.c.b16 %v737, %v737
          %v742 = vpack.c.b16 %v738, %v738
          %v743 = vpack.c.b16 %v739, %v739
          %vm748 = vcmask 519168
          %749 = vst.msk [vmem:[%s345] sm:$0xf] %vm748, %v740
          %750 = vst.msk [vmem:[%s345 + $0x4] sm:$0xf] %vm748, %v741
          %751 = vst.msk [vmem:[%s345 + $0x8] sm:$0xf] %vm748, %v742
          %752 = vst.msk [vmem:[%s345 + $0xc] sm:$0xf] %vm748, %v743
        $region68: #{tpu_custom_call.1} parent=39 // pred_fallthru
          _
        %s753 = sand.u32 %s165, 1
        %s754 = scalar_lea.sflag [#allocation6], %s753
        %s755 = sand.u32 %s165, 1
        %s756 = smul.addr %s755, 16
        %s757 = scalar_lea.vmem [#allocation13], %s756
        // Predicated region
        $region69: #{tpu_custom_call.1} parent=39 // pred_check
          %p758 = pneg %p175
        $region70: #{tpu_custom_call.1} parent=39 // pred_check_branch
          %760 = sbr.rel (%p758) target = $region72
        $region71: #{tpu_custom_call.1} parent=39 // pred_region
          %s762 = ssub.s32 256, 256
          %763 = vsyncadd %s754, %s762
          %s764 = smul.addr %s30, 4
          %s765 = smul.addr %s764, 64
          %s766 = scalar_lea.hbm %s5, %s765
          %s767 = sshll.u32 %s757, 4
          %s768 = int_to_ptr.vmem [resolvable:$true] %s767
          %773 = dma.vmem_to_hbm [thread:$0]  %s768, 256, %s766, %s754, 64, 64, 4
        $region72: #{tpu_custom_call.1} parent=39 // pred_fallthru
          _
      $region40: #{tpu_custom_call.1} parent=5 // pred_fallthru
        _
      %p774 = scmp.le.s32.totalorder 2, %s21
      // Predicated region
      $region73: #{tpu_custom_call.1} parent=5 // pred_check
        %p775 = pneg %p774
      $region74: #{tpu_custom_call.1} parent=5 // pred_check_branch
        %777 = sbr.rel (%p775) target = $region76
      $region75: #{tpu_custom_call.1} parent=5 // pred_region
        %s778 = ssub.s32 %s21, 2
        // Predicated region
        $region77: #{tpu_custom_call.1} parent=75 // pred_check
          %p779 = pneg %p181
        $region78: #{tpu_custom_call.1} parent=75 // pred_check_branch
          %781 = sbr.rel (%p779) target = $region80
        $region79: #{tpu_custom_call.1} parent=75 // pred_region
          %s782 = sand.u32 %s166, 1
          %s783 = scalar_lea.sflag [#allocation6], %s782
          %s784 = sand.u32 %s166, 1
          %s785 = smul.addr %s784, 16
          %s786 = scalar_lea.vmem [#allocation13], %s785
          %787 = dma.done %s783, 256
        $region80: #{tpu_custom_call.1} parent=75 // pred_fallthru
          _
      $region76: #{tpu_custom_call.1} parent=5 // pred_fallthru
        _
    $region6: #{tpu_custom_call.1} parent=1 // loop_footer
      %s25 = sadd.s32 1, %s21
    $region7: #{tpu_custom_call.1} parent=1 // loop_footer_branch
      %20 = sbr.rel target = $region3
    $region8: #{tpu_custom_call.1} parent=1 // loop_exit
      _
    %788 = vsyncpa [#allocation5], 1
    %s789 = scalar_lea.sflag [#allocation5], 1
    %790 = vsyncpa %s789, 1
    %791 = vsyncpa [#allocation8], 1
    %s792 = scalar_lea.sflag [#allocation8], 1
    %793 = vsyncpa %s792, 1
    %794 = vsyncpa [#allocation11], 1
    %795 = vsyncpa [#allocation6], 1
    %s796 = scalar_lea.sflag [#allocation6], 1
    %797 = vsyncpa %s796, 1

</llo_original>
